<compile_context>
chip_gen: v7x
topology: tpu7x:2x2x1
jax: 0.10.0
libtpu: 0.0.40
codegen_flags: <defaults>
</compile_context>

<pallas_src>
import functools

import jax
import jax.numpy as jnp
from jax.experimental import pallas as pl
from jax.experimental.pallas import tpu as pltpu


def _online_lse_kernel(scores_ref, lse_ref, m_ref, l_ref, *,
                       vocab, tail_start, mask_tail):
    """One (row-tile, vocab-tile) step of an online log-sum-exp reduction.

    scores_ref : (RT, TV) bf16/f32  raw model logits (rows = T*B, native layout)
    lse_ref    : (RT, 1)  f32       per-row logsumexp, written at last vocab step
    m_ref/l_ref: (RT, 1)  f32       running max / running sum-exp scratch
    """
    v_idx = pl.program_id(1)
    num_v = pl.num_programs(1)

    @pl.when(v_idx == 0)
    def _init():
        m_ref[...] = jnp.full(m_ref.shape, -jnp.inf, jnp.float32)
        l_ref[...] = jnp.zeros(l_ref.shape, jnp.float32)

    x = scores_ref[...]                                  # (RT, TV), input dtype

    def update(xb):
        # Flash-style running max / running sum-exp update.  Max is taken in the
        # input dtype (bf16 VPU on v6e/v7x); only the exp path is f32.
        m_prev = m_ref[...]
        m_tile = jnp.max(xb, axis=1, keepdims=True).astype(jnp.float32)
        m_new = jnp.maximum(m_prev, m_tile)
        p_sum = jnp.sum(jnp.exp(xb.astype(jnp.float32) - m_new), axis=1,
                        keepdims=True)
        l_ref[...] = l_ref[...] * jnp.exp(m_prev - m_new) + p_sum
        m_ref[...] = m_new

    if mask_tail:
        # Ragged last vocab tile: lanes >= len(tokenizer) are excluded from the
        # log-sum-exp (this implements the [:, :, :len(tokenizer)] slice).
        # Interior tiles pay no mask cost at all.
        @pl.when(v_idx < num_v - 1)
        def _interior():
            update(x)

        @pl.when(v_idx == num_v - 1)
        def _tail():
            lane = jax.lax.broadcasted_iota(jnp.int32, (1, x.shape[1]), 1) + tail_start
            update(jnp.where(lane < vocab, x, jnp.asarray(-jnp.inf, dtype=x.dtype)))
    else:
        update(x)

    @pl.when(v_idx == num_v - 1)
    def _finalize():
        lse_ref[...] = m_ref[...] + jnp.log(l_ref[...])


def llava_sender_logprobs(scores_stacked, gen_tokens, eos_token_id, tokenizer_vocab,
                          *, v_tile=None, r_tile=None,
                          vmem_tile_budget=32 * 1024 * 1024,
                          vmem_limit_bytes=64 * 1024 * 1024):
    """Mirrors the post-`generate` math of LLavaSender.forward.

    scores_stacked : (T, B, V_model) bf16/f32 -- torch.stack(gen_dict.scores), native layout
    gen_tokens     : (B, T+1)        i32      -- gen_dict.sequences
    Returns per-caption mean token log-probs of shape (B,) f32.
    """
    T, B, v_model = scores_stacked.shape
    max_k = gen_tokens.shape[1]
    assert max_k == T + 1
    vocab = int(tokenizer_vocab)
    assert vocab <= v_model

    # ---- tiny (B, T+1)-sized glue: EOS mask and message lengths (plain JAX) ----
    end_of_caption = gen_tokens == eos_token_id
    extra_tokens = jnp.cumsum(end_of_caption.astype(jnp.int32), axis=1) > 0
    msg_lengths = (max_k - jnp.sum(extra_tokens, axis=1)).astype(jnp.float32)
    # NOTE: deviates from PyTorch only when EOS is the very first generated
    # token (PyTorch divides by zero -> inf/nan); we clamp the length to 1.
    msg_lengths = jnp.maximum(msg_lengths, 1.0)
    mask = (~extra_tokens).astype(jnp.float32)           # (B, T+1)

    # ---- flatten to (rows, V): free row-major reshape of stack(scores) ----
    rows = T * B
    scores_flat = scores_stacked.reshape(rows, v_model)

    # Generated-token raw logits gathered in the wrapper (T*B tiny reads); the
    # kernel only has to produce the per-row logsumexp.
    tokens_tb = jnp.clip(gen_tokens[:, :-1].astype(jnp.int32), 0, vocab - 1).T  # (T, B)
    tok_flat = tokens_tb.reshape(rows)
    token_logits = jnp.take_along_axis(
        scores_flat, tok_flat[:, None], axis=1)[:, 0].astype(jnp.float32)        # (rows,)

    # ---- row-tile selection: full sublanes; >= 2 blocks on the parallel axis
    #      whenever there is enough work (keeps v7x's 2nd TensorCore busy) ----
    if r_tile is None:
        rt = 256
        if rows >= 16:
            rt = min(rt, max(8, (pl.cdiv(rows, 2) // 8) * 8))
        rt = min(rt, rows)
    else:
        rt = min(int(r_tile), rows)
    if rows > 8:
        rt = max(8, (rt // 8) * 8)
    num_r = pl.cdiv(rows, rt)

    # ---- vocab-tile selection ----
    in_itemsize = jnp.dtype(scores_flat.dtype).itemsize
    vocab_pad = pl.cdiv(vocab, 128) * 128
    # VMEM per lane column of one block: double-buffered input + ~3 f32
    # temporaries (cast / mask / exp intermediates) materialized per tile.
    bytes_per_lane = rt * (2 * in_itemsize + 3 * 4)
    budget_tv = max(128, (vmem_tile_budget // bytes_per_lane) // 128 * 128)
    if v_tile is not None:
        assert v_tile % 128 == 0
        max_tv = min(int(v_tile), vocab_pad)
    else:
        max_tv = min(budget_tv, vocab_pad)

    # Prefer a vocab tile that divides the tokenizer vocab exactly (no ragged
    # tail at all, e.g. 3200/6400 for vocab=32000); otherwise the largest
    # in-bounds tile, with the tail mask applied only on the last vocab tile.
    tv = None
    for cand in range(max_tv, max(0, max_tv // 2 - 1), -128):
        if cand > 0 and vocab % cand == 0:
            tv = cand
            break
    if tv is None:
        for cand in range(max_tv, 0, -128):
            if pl.cdiv(vocab, cand) * cand <= v_model:
                tv = cand
                break
    if tv is None:
        # Rare: model logit width narrower than round_up(vocab, 128); pad lanes.
        scores_flat = jnp.pad(scores_flat, ((0, 0), (0, vocab_pad - v_model)))
        v_model = vocab_pad
        tv = min(max_tv, vocab_pad)

    num_v = pl.cdiv(vocab, tv)
    mask_tail = (num_v * tv) != vocab
    v_proc = num_v * tv

    cost = pl.CostEstimate(
        flops=5 * rows * v_proc,
        transcendentals=rows * v_proc,
        bytes_accessed=rows * v_proc * in_itemsize + rows * 4,
    )

    kernel = functools.partial(
        _online_lse_kernel, vocab=vocab,
        tail_start=(num_v - 1) * tv, mask_tail=mask_tail)

    lse = pl.pallas_call(
        kernel,
        out_shape=jax.ShapeDtypeStruct((rows, 1), jnp.float32),
        grid=(num_r, num_v),
        in_specs=[pl.BlockSpec((rt, tv), lambda r, v: (r, v))],
        out_specs=pl.BlockSpec((rt, 1), lambda r, v: (r, 0)),
        scratch_shapes=[pltpu.VMEM((rt, 1), jnp.float32),
                        pltpu.VMEM((rt, 1), jnp.float32)],
        compiler_params=pltpu.CompilerParams(
            dimension_semantics=("parallel", "arbitrary"),
            vmem_limit_bytes=vmem_limit_bytes,
        ),
        cost_estimate=cost,
    )(scores_flat)                                        # (rows, 1) f32

    # ---- tiny epilogue on (B, T)/(B,) data ----
    token_logp = (token_logits - lse[:, 0]).reshape(T, B).T   # (B, T)
    masked = token_logp * mask[:, :-1]
    return jnp.sum(masked, axis=1) / msg_lengths


def llava_sender_forward(scores_stacked, gen_tokens, eos_token_id, tokenizer_vocab,
                         key, **kwargs):
    """Full forward-equivalent: (decoded_captions, logprobs, randn(1))."""
    # TODO(synk): model.generate (7B LLaVA autoregressive decode) has no Pallas
    # equivalent here; the generation outputs (scores / sequences) are inputs.
    logprobs = llava_sender_logprobs(scores_stacked, gen_tokens, eos_token_id,
                                     tokenizer_vocab, **kwargs)
    # TODO(synk): tokenizer.batch_decode (string detokenization) has no Pallas
    # equivalent; return placeholder captions.
    captions = [f"caption_{i}" for i in range(gen_tokens.shape[0])]
    return captions, logprobs, jax.random.normal(key, (1,))


def _reference_logprobs(scores_stacked, gen_tokens, eos_token_id, tokenizer_vocab):
    """Pure-JAX reference mirroring the PyTorch math, for verification."""
    scores = jnp.transpose(scores_stacked[:, :, :tokenizer_vocab], (1, 0, 2))
    scores = scores.astype(jnp.float32)
    max_k = gen_tokens.shape[1]
    end_of_caption = gen_tokens == eos_token_id
    extra_tokens = jnp.cumsum(end_of_caption.astype(jnp.int32), axis=1) > 0
    msg_lengths = (max_k - jnp.sum(extra_tokens, axis=1)).astype(jnp.float32)
    mask = (~extra_tokens).astype(jnp.float32)
    logprobs = jax.nn.log_softmax(scores, axis=-1)
    idx = jnp.clip(gen_tokens[:, :-1].astype(jnp.int32), 0, tokenizer_vocab - 1)
    gathered = jnp.take_along_axis(logprobs, idx[..., None], axis=-1)[..., 0]
    gathered = gathered * mask[:, :-1]
    return jnp.sum(gathered, axis=1) / msg_lengths


if __name__ == "__main__":
    key = jax.random.PRNGKey(0)
    k_scores, k_tokens, k_tokens2, k_rand = jax.random.split(key, 4)

    # Small synthetic shapes consistent with the forward semantics:
    #   B captions, T scored generation steps (T+1 generated tokens), model
    #   logit width V_MODEL, tokenizer vocab VOCAB < V_MODEL (exercises the
    #   folded vocab slice + ragged-tail mask), multiple row and vocab tiles.
    B = 2                  # batch of images
    T = 16                 # number of scored generation steps
    MAX_LEN_BATCH = T + 1  # gen_tokens length
    V_MODEL = 512          # model logit width (pre-slice)
    VOCAB = 320            # len(tokenizer), not a multiple of the 128-lane tile
    EOS_TOKEN_ID = 2

    # Native layout (T, B, V_model) in bf16 — what stack(gen_dict.scores) yields.
    scores_stacked = jax.random.normal(
        k_scores, (T, B, V_MODEL), dtype=jnp.float32).astype(jnp.bfloat16)
    gen_tokens = jax.random.randint(k_tokens, (B, MAX_LEN_BATCH), 0, VOCAB,
                                    dtype=jnp.int32)
    # First token must not be EOS (a zero-length caption divides by zero in the
    # PyTorch reference); plant an EOS mid-sequence so the mask path is hit.
    gen_tokens = gen_tokens.at[:, 0].set(11)
    gen_tokens = gen_tokens.at[0, 6].set(EOS_TOKEN_ID)

    ref = _reference_logprobs(scores_stacked, gen_tokens, EOS_TOKEN_ID, VOCAB)

    # 1) Small tiles: multiple row blocks (parallel axis) x multiple vocab
    #    blocks (online LSE) with a ragged tail masked only on the last tile.
    captions, logprobs, noise = llava_sender_forward(
        scores_stacked, gen_tokens, EOS_TOKEN_ID, VOCAB, k_rand, v_tile=128)
    logprobs = jax.block_until_ready(logprobs)
    jax.block_until_ready(noise)
    assert logprobs.shape == (B,)
    assert jnp.allclose(logprobs, ref, atol=1e-3, rtol=1e-3), (logprobs, ref)

    # 2) Automatic tile selection (single padded vocab tile, masked tail).
    logprobs_auto = jax.block_until_ready(
        llava_sender_logprobs(scores_stacked, gen_tokens, EOS_TOKEN_ID, VOCAB))
    assert jnp.allclose(logprobs_auto, ref, atol=1e-3, rtol=1e-3), (logprobs_auto, ref)

    # 3) Divisor-aligned vocab (no tail mask anywhere): vocab = 256, tv = 128.
    VOCAB2 = 256
    gen_tokens2 = jax.random.randint(k_tokens2, (B, MAX_LEN_BATCH), 0, VOCAB2,
                                     dtype=jnp.int32)
    gen_tokens2 = gen_tokens2.at[:, 0].set(11)
    gen_tokens2 = gen_tokens2.at[1, 4].set(EOS_TOKEN_ID)
    ref2 = _reference_logprobs(scores_stacked, gen_tokens2, EOS_TOKEN_ID, VOCAB2)
    logprobs2 = jax.block_until_ready(
        llava_sender_logprobs(scores_stacked, gen_tokens2, EOS_TOKEN_ID, VOCAB2,
                              v_tile=128))
    assert jnp.allclose(logprobs2, ref2, atol=1e-3, rtol=1e-3), (logprobs2, ref2)

    print("KERNEL_OK")
</pallas_src>

<mosaic_0001>
module attributes {stable_mosaic.version = 11 : i64} {
  func.func @_online_lse_kernel(%arg0: i32, %arg1: i32, %arg2: memref<16x128xbf16, #tpu.memory_space<vmem>>, %arg3: memref<16x1xf32, #tpu.memory_space<vmem>>, %arg4: memref<16x1xf32, #tpu.memory_space<vmem>>, %arg5: memref<16x1xf32, #tpu.memory_space<vmem>>) attributes {dimension_semantics = [#tpu.dimension_semantics<parallel>, #tpu.dimension_semantics<arbitrary>], iteration_bounds = array<i64: 2, 3>, scalar_prefetch = 0 : i64, scratch_operands = 2 : i64, tpu.core_type = #tpu.core_type<tc>, window_params = [{transform_indices = @transform_0, window_bounds = array<i64: 16, 128>}, {transform_indices = @transform_1, window_bounds = array<i64: 16, 1>}]} {
    %c0_i32 = arith.constant 0 : i32
    %0 = arith.cmpi eq, %arg1, %c0_i32 : i32
    %1 = arith.extui %0 : i1 to i32
    %c0_i32_0 = arith.constant 0 : i32
    %2 = arith.cmpi ne, %1, %c0_i32_0 : i32
    scf.if %2 {
      %cst = arith.constant 0xFF800000 : f32
      %13 = vector.broadcast %cst : f32 to vector<16x1xf32>
      %c0_7 = arith.constant 0 : index
      %c0_8 = arith.constant 0 : index
      %14 = vector.load %arg4[%c0_7, %c0_8] : memref<16x1xf32, #tpu.memory_space<vmem>>, vector<16x1xf32>
      tpu.vector_store %arg4[%c0_7, %c0_8], %13 {strides = array<i32>} : memref<16x1xf32, #tpu.memory_space<vmem>>, vector<16x1xf32>,
      %cst_9 = arith.constant 0.000000e+00 : f32
      %15 = vector.broadcast %cst_9 : f32 to vector<16x1xf32>
      %c0_10 = arith.constant 0 : index
      %c0_11 = arith.constant 0 : index
      %16 = vector.load %arg5[%c0_10, %c0_11] : memref<16x1xf32, #tpu.memory_space<vmem>>, vector<16x1xf32>
      tpu.vector_store %arg5[%c0_10, %c0_11], %15 {strides = array<i32>} : memref<16x1xf32, #tpu.memory_space<vmem>>, vector<16x1xf32>,
    } else {
    }
    %c0 = arith.constant 0 : index
    %c0_1 = arith.constant 0 : index
    %3 = vector.load %arg2[%c0, %c0_1] : memref<16x128xbf16, #tpu.memory_space<vmem>>, vector<16x128xbf16>
    %c2_i32 = arith.constant 2 : i32
    %4 = arith.cmpi slt, %arg1, %c2_i32 : i32
    %5 = arith.extui %4 : i1 to i32
    %c0_i32_2 = arith.constant 0 : i32
    %6 = arith.cmpi ne, %5, %c0_i32_2 : i32
    scf.if %6 {
      %c0_7 = arith.constant 0 : index
      %c0_8 = arith.constant 0 : index
      %13 = vector.load %arg4[%c0_7, %c0_8] : memref<16x1xf32, #tpu.memory_space<vmem>>, vector<16x1xf32>
      %cst = arith.constant dense<0xFF80> : vector<16xbf16>
      %14 = vector.multi_reduction <maximumf>, %3, %cst [1] : vector<16x128xbf16> to vector<16xbf16>
      %15 = vector.shape_cast %14 : vector<16xbf16> to vector<16x1xbf16>
      %16 = arith.extf %15 : vector<16x1xbf16> to vector<16x1xf32>
      %17 = arith.maximumf %13, %16 : vector<16x1xf32>
      %18 = arith.extf %3 : vector<16x128xbf16> to vector<16x128xf32>
      %19 = vector.broadcast %17 : vector<16x1xf32> to vector<16x128xf32>
      %20 = arith.subf %18, %19 : vector<16x128xf32>
      %21 = math.exp %20 : vector<16x128xf32>
      %cst_9 = arith.constant dense<0.000000e+00> : vector<16xf32>
      %22 = vector.multi_reduction <add>, %21, %cst_9 [1] : vector<16x128xf32> to vector<16xf32>
      %23 = vector.shape_cast %22 : vector<16xf32> to vector<16x1xf32>
      %c0_10 = arith.constant 0 : index
      %c0_11 = arith.constant 0 : index
      %24 = vector.load %arg5[%c0_10, %c0_11] : memref<16x1xf32, #tpu.memory_space<vmem>>, vector<16x1xf32>
      %25 = arith.subf %13, %17 : vector<16x1xf32>
      %26 = math.exp %25 : vector<16x1xf32>
      %27 = arith.mulf %24, %26 : vector<16x1xf32>
      %28 = arith.addf %27, %23 : vector<16x1xf32>
      %c0_12 = arith.constant 0 : index
      %c0_13 = arith.constant 0 : index
      %29 = vector.load %arg5[%c0_12, %c0_13] : memref<16x1xf32, #tpu.memory_space<vmem>>, vector<16x1xf32>
      tpu.vector_store %arg5[%c0_12, %c0_13], %28 {strides = array<i32>} : memref<16x1xf32, #tpu.memory_space<vmem>>, vector<16x1xf32>,
      %c0_14 = arith.constant 0 : index
      %c0_15 = arith.constant 0 : index
      %30 = vector.load %arg4[%c0_14, %c0_15] : memref<16x1xf32, #tpu.memory_space<vmem>>, vector<16x1xf32>
      tpu.vector_store %arg4[%c0_14, %c0_15], %17 {strides = array<i32>} : memref<16x1xf32, #tpu.memory_space<vmem>>, vector<16x1xf32>,
    } else {
    }
    %c2_i32_3 = arith.constant 2 : i32
    %7 = arith.cmpi eq, %arg1, %c2_i32_3 : i32
    %8 = arith.extui %7 : i1 to i32
    %c0_i32_4 = arith.constant 0 : i32
    %9 = arith.cmpi ne, %8, %c0_i32_4 : i32
    scf.if %9 {
      %13 = tpu.iota {dimensions = array<i32: 1>} : vector<1x128xi32>
      %c256_i32 = arith.constant 256 : i32
      %14 = vector.broadcast %c256_i32 : i32 to vector<1x128xi32>
      %15 = arith.addi %13, %14 : vector<1x128xi32>
      %c320_i32 = arith.constant 320 : i32
      %16 = vector.broadcast %c320_i32 : i32 to vector<1x128xi32>
      %17 = arith.cmpi slt, %15, %16 : vector<1x128xi32>
      %cst = arith.constant 0xFF80 : bf16
      %18 = vector.shape_cast %17 : vector<1x128xi1> to vector<1x128xi1>
      %19 = vector.broadcast %18 : vector<1x128xi1> to vector<16x128xi1>
      %20 = vector.broadcast %cst : bf16 to vector<16x128xbf16>
      %21 = arith.select %19, %3, %20 : vector<16x128xi1>, vector<16x128xbf16>
      %c0_7 = arith.constant 0 : index
      %c0_8 = arith.constant 0 : index
      %22 = vector.load %arg4[%c0_7, %c0_8] : memref<16x1xf32, #tpu.memory_space<vmem>>, vector<16x1xf32>
      %cst_9 = arith.constant dense<0xFF80> : vector<16xbf16>
      %23 = vector.multi_reduction <maximumf>, %21, %cst_9 [1] : vector<16x128xbf16> to vector<16xbf16>
      %24 = vector.shape_cast %23 : vector<16xbf16> to vector<16x1xbf16>
      %25 = arith.extf %24 : vector<16x1xbf16> to vector<16x1xf32>
      %26 = arith.maximumf %22, %25 : vector<16x1xf32>
      %27 = arith.extf %21 : vector<16x128xbf16> to vector<16x128xf32>
      %28 = vector.broadcast %26 : vector<16x1xf32> to vector<16x128xf32>
      %29 = arith.subf %27, %28 : vector<16x128xf32>
      %30 = math.exp %29 : vector<16x128xf32>
      %cst_10 = arith.constant dense<0.000000e+00> : vector<16xf32>
      %31 = vector.multi_reduction <add>, %30, %cst_10 [1] : vector<16x128xf32> to vector<16xf32>
      %32 = vector.shape_cast %31 : vector<16xf32> to vector<16x1xf32>
      %c0_11 = arith.constant 0 : index
      %c0_12 = arith.constant 0 : index
      %33 = vector.load %arg5[%c0_11, %c0_12] : memref<16x1xf32, #tpu.memory_space<vmem>>, vector<16x1xf32>
      %34 = arith.subf %22, %26 : vector<16x1xf32>
      %35 = math.exp %34 : vector<16x1xf32>
      %36 = arith.mulf %33, %35 : vector<16x1xf32>
      %37 = arith.addf %36, %32 : vector<16x1xf32>
      %c0_13 = arith.constant 0 : index
      %c0_14 = arith.constant 0 : index
      %38 = vector.load %arg5[%c0_13, %c0_14] : memref<16x1xf32, #tpu.memory_space<vmem>>, vector<16x1xf32>
      tpu.vector_store %arg5[%c0_13, %c0_14], %37 {strides = array<i32>} : memref<16x1xf32, #tpu.memory_space<vmem>>, vector<16x1xf32>,
      %c0_15 = arith.constant 0 : index
      %c0_16 = arith.constant 0 : index
      %39 = vector.load %arg4[%c0_15, %c0_16] : memref<16x1xf32, #tpu.memory_space<vmem>>, vector<16x1xf32>
      tpu.vector_store %arg4[%c0_15, %c0_16], %26 {strides = array<i32>} : memref<16x1xf32, #tpu.memory_space<vmem>>, vector<16x1xf32>,
    } else {
    }
    %c2_i32_5 = arith.constant 2 : i32
    %10 = arith.cmpi eq, %arg1, %c2_i32_5 : i32
    %11 = arith.extui %10 : i1 to i32
    %c0_i32_6 = arith.constant 0 : i32
    %12 = arith.cmpi ne, %11, %c0_i32_6 : i32
    scf.if %12 {
      %c0_7 = arith.constant 0 : index
      %c0_8 = arith.constant 0 : index
      %13 = vector.load %arg4[%c0_7, %c0_8] : memref<16x1xf32, #tpu.memory_space<vmem>>, vector<16x1xf32>
      %c0_9 = arith.constant 0 : index
      %c0_10 = arith.constant 0 : index
      %14 = vector.load %arg5[%c0_9, %c0_10] : memref<16x1xf32, #tpu.memory_space<vmem>>, vector<16x1xf32>
      %15 = math.log %14 : vector<16x1xf32>
      %16 = arith.addf %13, %15 : vector<16x1xf32>
      %c0_11 = arith.constant 0 : index
      %c0_12 = arith.constant 0 : index
      %17 = vector.load %arg3[%c0_11, %c0_12] : memref<16x1xf32, #tpu.memory_space<vmem>>, vector<16x1xf32>
      tpu.vector_store %arg3[%c0_11, %c0_12], %16 {strides = array<i32>} : memref<16x1xf32, #tpu.memory_space<vmem>>, vector<16x1xf32>,
    } else {
    }
    return
  }
  func.func @transform_0(%arg0: i32, %arg1: i32) -> (i32, i32) {
    %c0_i32 = arith.constant 0 : i32
    return %arg0, %arg1 : i32, i32
  }
  func.func @transform_1(%arg0: i32, %arg1: i32) -> (i32, i32) {
    %c0_i32 = arith.constant 0 : i32
    %c0_i32_0 = arith.constant 0 : i32
    return %arg0, %c0_i32 : i32, i32
  }
}

</mosaic_0001>

<llo_original>
// kernel: tpu_custom_call.1
$region0: #{tpu_custom_call.1}
  #allocation0 [shape = 'u32[]', space=smem, size = 0x4, offset = 0x4, fixed_abs, tag = 'smem constant byte address 0x4 - core index']
  #allocation1 [shape = 'u32[144,128]{1,0:T(1,128)}', space=vmem, size = 0x12000, scoped, tag = 'internal scratch']
  #allocation2 [shape = 'f32[16,1]{1,0:T(8,128)}', space=vmem, size = 0x2000, scoped, tag = 'scratch operand']
  #allocation3 [shape = 'f32[16,1]{1,0:T(8,128)}', space=vmem, size = 0x2000, scoped, tag = 'scratch operand']
  %s0 = inlined_call_operand.hbm [shape: bf16[32,512], index: 0, kind: input, shape index: {}]
  %s1 = inlined_call_operand.hbm [shape: f32[32,1], index: 1, kind: output, shape index: {}]
  %s2 = sld [smem:[#allocation0]]
  $region53: #{tpu_custom_call.1} parent=0
    _
  %s4 = ssub.s32 1, %s2
  %s5 = scalar_select 0, %s4, %s2
  $region1: #{tpu_custom_call.1} parent=0
    #allocation4 [shape = 'u8[8192]{0}', space=vmem, size = 0x2000, scoped, tag = 'input window, operand 0']
    #allocation5 [shape = 's32[2]{0}', space=sflag, size = 0x8, scoped, tag = 'scoped memory for tpu_custom_call.1']
    #allocation6 [shape = 's32[2]{0}', space=sflag, size = 0x8, scoped, tag = 'scoped memory for tpu_custom_call.1']
    #allocation7 [shape = 'u8[16384]{0}', space=vmem, size = 0x4000, scoped, tag = 'output window, operand 0']
    %6 = vsyncpa [#allocation5], 0
    %s7 = scalar_lea.sflag [#allocation5], 1
    %8 = vsyncpa %s7, 0
    %9 = vsyncpa [#allocation6], 0
    %s10 = scalar_lea.sflag [#allocation6], 1
    %11 = vsyncpa %s10, 0
    loop: start=0, step=1, limit=8
    $region2: #{tpu_custom_call.1} parent=1 // loop_pre_header
      _
    $region3: #{tpu_custom_call.1} parent=1 // loop_header
      %s13 = sphi 0, %s17
      %p14 = scmp.ge.s32.totalorder %s13, 8
      %s20 = sphi 0, %s32
      %s21 = sphi 0, %s28
      %s22 = sphi 0, %s20
      %s23 = sphi 0, %s21
      %s24 = sphi 0, %s22
      %s25 = sphi 0, %s23
      %s37 = sphi 0, %s39
      %s40 = sphi 0, %s37
      %s41 = sphi 0, %s40
      %s57 = sphi 0, %s41
      %s63 = sphi 0, %s65
      %s66 = sphi 0, %s63
      %s67 = sphi 0, %s66
      %s83 = sphi 0, %s67
    $region4: #{tpu_custom_call.1} parent=1 // loop_header_branch
      %16 = sbr.rel (%p14) target = $region8
    $region5: #{tpu_custom_call.1} parent=1 // loop_body
      %s18 = ssub.s32 %s13, 1
      %s19 = ssub.s32 %s13, 2
      %s26 = sadd.s32 1, %s21
      %p27 = scmp.ge.s32.totalorder %s26, 3
      %s28 = scalar_select %p27, 0, %s26
      %s29 = sadd.s32 1, %s20
      %s30 = scalar_select %p27, %s29, %s20
      %p31 = scmp.ge.s32.totalorder %s30, 2
      %s32 = scalar_select %p31, 0, %s30
      %s33 = ssub.s32 %s20, %s32
      %s34 = ssub.s32 %s21, %s28
      %s35 = sor.u32 %s33, %s34
      %p36 = scmp.eq.s32.totalorder %s35, 0
      %s38 = sadd.s32 %s37, 1
      %s39 = scalar_select %p36, %s37, %s38
      %p42 = pneg %p36
      %p43 = scmp.eq.s32.totalorder %s13, 5
      %p44 = por %p42, %p43
      %p45 = scmp.ne.s32.totalorder %s37, %s40
      %p46 = scmp.eq.s32.totalorder %s13, 0
      %p47 = por %p45, %p46
      %p48 = scmp.ne.s32.totalorder %s37, %s40
      %p49 = scmp.eq.s32.totalorder %s18, 5
      %p50 = por %p48, %p49
      %p51 = scmp.ne.s32.totalorder %s40, %s41
      %p52 = scmp.eq.s32.totalorder %s18, 0
      %p53 = por %p51, %p52
      %p54 = scmp.ne.s32.totalorder %s40, %s41
      %p55 = scmp.eq.s32.totalorder %s19, 5
      %p56 = por %p54, %p55
      %p58 = scmp.ne.s32.totalorder %s41, %s57
      %p59 = scmp.eq.s32.totalorder %s19, 0
      %p60 = por %p58, %p59
      %s61 = ssub.s32 %s20, %s32
      %p62 = scmp.eq.s32.totalorder %s61, 0
      %s64 = sadd.s32 %s63, 1
      %s65 = scalar_select %p62, %s63, %s64
      %p68 = pneg %p62
      %p69 = scmp.eq.s32.totalorder %s13, 5
      %p70 = por %p68, %p69
      %p71 = scmp.ne.s32.totalorder %s63, %s66
      %p72 = scmp.eq.s32.totalorder %s13, 0
      %p73 = por %p71, %p72
      %p74 = scmp.ne.s32.totalorder %s63, %s66
      %p75 = scmp.eq.s32.totalorder %s18, 5
      %p76 = por %p74, %p75
      %p77 = scmp.ne.s32.totalorder %s66, %s67
      %p78 = scmp.eq.s32.totalorder %s18, 0
      %p79 = por %p77, %p78
      %p80 = scmp.ne.s32.totalorder %s66, %s67
      %p81 = scmp.eq.s32.totalorder %s19, 5
      %p82 = por %p80, %p81
      %p84 = scmp.ne.s32.totalorder %s67, %s83
      %p85 = scmp.eq.s32.totalorder %s19, 0
      %p86 = por %p84, %p85
      %p87 = scmp.le.s32.totalorder 1, %s13
      %p88 = scmp.lt.s32.totalorder %s13, 7
      %p89 = pnand %p87, %p88
      %p90 = pneg %p89
      // Predicated region
      $region9: #{tpu_custom_call.1} parent=5 // pred_check
        _
      $region10: #{tpu_custom_call.1} parent=5 // pred_check_branch
        %92 = sbr.rel (%p89) target = $region12
      $region11: #{tpu_custom_call.1} parent=5 // pred_region
        %s93 = ssub.s32 %s13, 1
      $region12: #{tpu_custom_call.1} parent=5 // pred_fallthru
        _
      %p94 = scmp.lt.s32.totalorder %s13, 6
      // Predicated region
      $region13: #{tpu_custom_call.1} parent=5 // pred_check
        %p95 = pneg %p94
      $region14: #{tpu_custom_call.1} parent=5 // pred_check_branch
        %97 = sbr.rel (%p95) target = $region16
      $region15: #{tpu_custom_call.1} parent=5 // pred_region
        // Predicated region
        $region17: #{tpu_custom_call.1} parent=15 // pred_check
          %p98 = pneg %p47
        $region18: #{tpu_custom_call.1} parent=15 // pred_check_branch
          %100 = sbr.rel (%p98) target = $region20
        $region19: #{tpu_custom_call.1} parent=15 // pred_region
          %s101 = sand.u32 %s37, 1
          %s102 = scalar_lea.sflag [#allocation5], %s101
          %s103 = sand.u32 %s37, 1
          %s104 = smul.addr %s103, 8
          %s105 = scalar_lea.vmem [#allocation4], %s104
          %s106 = smul.u32 2, %s20
          %s108 = ssub.s32 128, 128
          %109 = vsyncadd %s102, %s108
          %s110 = smul.addr %s106, 4
          %s111 = sadd.s32 %s21, %s110
          %s112 = smul.addr %s111, 64
          %s113 = scalar_lea.hbm %s0, %s112
          %s114 = sshll.u32 %s105, 4
          %s115 = int_to_ptr.vmem [resolvable:$true] %s114
          %120 = dma.hbm_to_vmem [thread:$0]  %s113, 128, %s115, %s102, 256, 64, 4
        $region20: #{tpu_custom_call.1} parent=15 // pred_fallthru
          _
      $region16: #{tpu_custom_call.1} parent=5 // pred_fallthru
        _
      %p121 = scmp.le.s32.totalorder 1, %s13
      %p122 = scmp.lt.s32.totalorder %s13, 7
      %p123 = pnand %p121, %p122
      %p124 = pneg %p123
      // Predicated region
      $region21: #{tpu_custom_call.1} parent=5 // pred_check
        _
      $region22: #{tpu_custom_call.1} parent=5 // pred_check_branch
        %126 = sbr.rel (%p123) target = $region24
      $region23: #{tpu_custom_call.1} parent=5 // pred_region
        %s127 = ssub.s32 %s13, 1
        %s128 = sand.u32 %s40, 1
        %s129 = scalar_lea.sflag [#allocation5], %s128
        %s130 = sand.u32 %s40, 1
        %s131 = smul.addr %s130, 8
        %s132 = scalar_lea.vmem [#allocation4], %s131
        // Predicated region
        $region25: #{tpu_custom_call.1} parent=23 // pred_check
          %p133 = pneg %p53
        $region26: #{tpu_custom_call.1} parent=23 // pred_check_branch
          %135 = sbr.rel (%p133) target = $region28
        $region27: #{tpu_custom_call.1} parent=23 // pred_region
          %136 = dma.done %s129, 128
        $region28: #{tpu_custom_call.1} parent=23 // pred_fallthru
          _
        %s137 = sand.u32 %s40, 1
        %s138 = scalar_lea.sflag [#allocation5], %s137
        %s139 = sand.u32 %s40, 1
        %s140 = smul.addr %s139, 8
        %s141 = scalar_lea.vmem [#allocation4], %s140
        %p142 = pneg %p53
        %p143 = pneg %p50
        %p144 = pneg %p79
        %p145 = pneg %p76
        %s146 = sand.u32 %s66, 1
        %s147 = scalar_lea.sflag [#allocation6], %s146
        %s148 = sand.u32 %s66, 1
        %s149 = smul.addr %s148, 16
        %s150 = scalar_lea.vmem [#allocation7], %s149
        %s151 = smul.u32 2, %s22
        %s152 = smul.u32 2, %s22
        %p154 = scmp.eq.s32.totalorder %s23, 0
        // Predicated region
        $region29: #{tpu_custom_call.1} parent=23 // pred_check
          %p155 = pneg %p154
        $region30: #{tpu_custom_call.1} parent=23 // pred_check_branch
          %157 = sbr.rel (%p155) target = $region32
        $region31: #{tpu_custom_call.1} parent=23 // pred_region
          %vm158 = vcmask 7168
          %159 = vst.msk [vmem:[#allocation2] sm:$0xff] %vm158, -inf
          %160 = vst.msk [vmem:[#allocation2 + $0x8] sm:$0xff] %vm158, -inf
          %161 = vst.msk [vmem:[#allocation3] sm:$0xff] %vm158, 0.0
          %162 = vst.msk [vmem:[#allocation3 + $0x8] sm:$0xff] %vm158, 0.0
        $region32: #{tpu_custom_call.1} parent=23 // pred_fallthru
          _
        %v163 = vld [vmem:[%s132] sm:$0xf]
        %v164 = vld [vmem:[%s132 + $0x4] sm:$0xf]
        %p165 = scmp.lt.s32.totalorder %s23, 2
        // Predicated region
        $region33: #{tpu_custom_call.1} parent=23 // pred_check
          %p166 = pneg %p165
        $region34: #{tpu_custom_call.1} parent=23 // pred_check_branch
          %168 = sbr.rel (%p166) target = $region36
        $region35: #{tpu_custom_call.1} parent=23 // pred_region
          %v169 = vld [vmem:[#allocation2] sm:$0xff]
          %v170 = vld [vmem:[#allocation2 + $0x8] sm:$0xff]
          %v173 = vunpack.c.l.b16 %v163
          %v174 = vunpack.c.l.b16 %v164
          %v175 = vpack.c.b16 %v174, %v173
          %177 = vmax.xlane.bf16.xlu0 %v175
          %v178 = vpop.xlane.xlu0 %177
          %v179 = vunpack.c.l.bf16 %v178
          %v180 = vunpack.c.h.bf16 %v178
          %v181 = vmax.f32 %v169, %v179
          %v182 = vmax.f32 %v170, %v180
          %v183 = vunpack.c.l.bf16 %v163
          %v184 = vunpack.c.l.bf16 %v164
          %186 = vset.pattern.permute.xlu0 0
          %187 = vperm.xlu0 %186, %v181
          %v188 = vpop.permute.xlu0 %187
          %191 = vset.pattern.permute.xlu0 0
          %192 = vperm.xlu0 %191, %v182
          %v193 = vpop.permute.xlu0 %192
          %v195 = vsub.f32 %v183, %v188
          %v196 = vsub.f32 %v184, %v193
          %v197 = vmul.f32 %v195, 1.442695
          %v198 = vpow.pop %v197
          %v199 = vmul.f32 %v196, 1.442695
          %v200 = vpow.pop %v199
          %201 = vadd.xlane.f32.xlu0 %v198
          %v202 = vpop.xlane.xlu0 %201
          %203 = vadd.xlane.f32.xlu0 %v200
          %v204 = vpop.xlane.xlu0 %203
          %v205 = vld [vmem:[#allocation3] sm:$0xff]
          %v206 = vld [vmem:[#allocation3 + $0x8] sm:$0xff]
          %v207 = vsub.f32 %v169, %v181
          %v208 = vsub.f32 %v170, %v182
          %v209 = vmul.f32 %v207, 1.442695
          %v210 = vpow.pop %v209
          %v211 = vmul.f32 %v208, 1.442695
          %v212 = vpow.pop %v211
          %v213 = vmul.f32 %v205, %v210
          %v214 = vmul.f32 %v206, %v212
          %v215 = vadd.f32 %v213, %v202
          %v216 = vadd.f32 %v214, %v204
          %vm217 = vcmask 7168
          %218 = vst.msk [vmem:[#allocation3] sm:$0xff] %vm217, %v215
          %219 = vst.msk [vmem:[#allocation3 + $0x8] sm:$0xff] %vm217, %v216
          %220 = vst.msk [vmem:[#allocation2] sm:$0xff] %vm217, %v181
          %221 = vst.msk [vmem:[#allocation2 + $0x8] sm:$0xff] %vm217, %v182
        $region36: #{tpu_custom_call.1} parent=23 // pred_fallthru
          _
        %p222 = scmp.eq.s32.totalorder %s23, 2
        // Predicated region
        $region37: #{tpu_custom_call.1} parent=23 // pred_check
          %p223 = pneg %p222
        $region38: #{tpu_custom_call.1} parent=23 // pred_check_branch
          %225 = sbr.rel (%p223) target = $region40
        $region39: #{tpu_custom_call.1} parent=23 // pred_region
          %v226 = vlaneseq
          %v227 = vand.u32 %v226, 127
          %v228 = vadd.s32 %v227, 256
          %vm229 = vcmp.lt.s32.totalorder %v228, 320
          %v230 = vsel %vm229, 1, 0
          %vm231 = vcmp.eq.s32.totalorder %v230, 1
          %vm232 = vmpackc.low %vm231, %vm231
          %v233 = vsel %vm232, %v163, 4286644096
          %v234 = vsel %vm232, %v164, 4286644096
          %v235 = vld [vmem:[#allocation2] sm:$0xff]
          %v236 = vld [vmem:[#allocation2 + $0x8] sm:$0xff]
          %v239 = vunpack.c.l.b16 %v233
          %v240 = vunpack.c.l.b16 %v234
          %v241 = vpack.c.b16 %v240, %v239
          %243 = vmax.xlane.bf16.xlu0 %v241
          %v244 = vpop.xlane.xlu0 %243
          %v245 = vunpack.c.l.bf16 %v244
          %v246 = vunpack.c.h.bf16 %v244
          %v247 = vmax.f32 %v235, %v245
          %v248 = vmax.f32 %v236, %v246
          %v249 = vunpack.c.l.bf16 %v233
          %v250 = vunpack.c.l.bf16 %v234
          %252 = vset.pattern.permute.xlu0 0
          %253 = vperm.xlu0 %252, %v247
          %v254 = vpop.permute.xlu0 %253
          %257 = vset.pattern.permute.xlu0 0
          %258 = vperm.xlu0 %257, %v248
          %v259 = vpop.permute.xlu0 %258
          %v261 = vsub.f32 %v249, %v254
          %v262 = vsub.f32 %v250, %v259
          %v263 = vmul.f32 %v261, 1.442695
          %v264 = vpow.pop %v263
          %v265 = vmul.f32 %v262, 1.442695
          %v266 = vpow.pop %v265
          %267 = vadd.xlane.f32.xlu0 %v264
          %v268 = vpop.xlane.xlu0 %267
          %269 = vadd.xlane.f32.xlu0 %v266
          %v270 = vpop.xlane.xlu0 %269
          %v271 = vld [vmem:[#allocation3] sm:$0xff]
          %v272 = vld [vmem:[#allocation3 + $0x8] sm:$0xff]
          %v273 = vsub.f32 %v235, %v247
          %v274 = vsub.f32 %v236, %v248
          %v275 = vmul.f32 %v273, 1.442695
          %v276 = vpow.pop %v275
          %v277 = vmul.f32 %v274, 1.442695
          %v278 = vpow.pop %v277
          %v279 = vmul.f32 %v271, %v276
          %v280 = vmul.f32 %v272, %v278
          %v281 = vadd.f32 %v279, %v268
          %v282 = vadd.f32 %v280, %v270
          %vm283 = vcmask 7168
          %284 = vst.msk [vmem:[#allocation3] sm:$0xff] %vm283, %v281
          %285 = vst.msk [vmem:[#allocation3 + $0x8] sm:$0xff] %vm283, %v282
          %286 = vst.msk [vmem:[#allocation2] sm:$0xff] %vm283, %v247
          %287 = vst.msk [vmem:[#allocation2 + $0x8] sm:$0xff] %vm283, %v248
          %v288 = vld [vmem:[#allocation2] sm:$0xff]
          %v289 = vld [vmem:[#allocation2 + $0x8] sm:$0xff]
          %v290 = vld [vmem:[#allocation3] sm:$0xff]
          %v291 = vld [vmem:[#allocation3 + $0x8] sm:$0xff]
          %v292 = vlog2.pop %v290
          %v293 = vmul.f32 %v292, 0.6931472
          %v294 = vlog2.pop %v291
          %v295 = vmul.f32 %v294, 0.6931472
          %v296 = vadd.f32 %v288, %v293
          %v297 = vadd.f32 %v289, %v295
          %298 = vst.msk [vmem:[%s150] sm:$0xff] %vm283, %v296
          %299 = vst.msk [vmem:[%s150 + $0x8] sm:$0xff] %vm283, %v297
        $region40: #{tpu_custom_call.1} parent=23 // pred_fallthru
          _
        %s300 = sand.u32 %s66, 1
        %s301 = scalar_lea.sflag [#allocation6], %s300
        %s302 = sand.u32 %s66, 1
        %s303 = smul.addr %s302, 16
        %s304 = scalar_lea.vmem [#allocation7], %s303
        // Predicated region
        $region41: #{tpu_custom_call.1} parent=23 // pred_check
          %p305 = pneg %p76
        $region42: #{tpu_custom_call.1} parent=23 // pred_check_branch
          %307 = sbr.rel (%p305) target = $region44
        $region43: #{tpu_custom_call.1} parent=23 // pred_region
          %s308 = smul.u32 2, %s22
          %s310 = ssub.s32 256, 256
          %311 = vsyncadd %s301, %s310
          %s312 = smul.addr %s308, 128
          %s313 = scalar_lea.hbm %s1, %s312
          %s314 = sshll.u32 %s304, 4
          %s315 = int_to_ptr.vmem [resolvable:$true] %s314
          %320 = dma.vmem_to_hbm [thread:$0]  %s315, 256, %s313, %s301, 128, 128, 8
        $region44: #{tpu_custom_call.1} parent=23 // pred_fallthru
          _
      $region24: #{tpu_custom_call.1} parent=5 // pred_fallthru
        _
      %p321 = scmp.le.s32.totalorder 2, %s13
      // Predicated region
      $region45: #{tpu_custom_call.1} parent=5 // pred_check
        %p322 = pneg %p321
      $region46: #{tpu_custom_call.1} parent=5 // pred_check_branch
        %324 = sbr.rel (%p322) target = $region48
      $region47: #{tpu_custom_call.1} parent=5 // pred_region
        %s325 = ssub.s32 %s13, 2
        // Predicated region
        $region49: #{tpu_custom_call.1} parent=47 // pred_check
          %p326 = pneg %p82
        $region50: #{tpu_custom_call.1} parent=47 // pred_check_branch
          %328 = sbr.rel (%p326) target = $region52
        $region51: #{tpu_custom_call.1} parent=47 // pred_region
          %s329 = sand.u32 %s67, 1
          %s330 = scalar_lea.sflag [#allocation6], %s329
          %s331 = sand.u32 %s67, 1
          %s332 = smul.addr %s331, 16
          %s333 = scalar_lea.vmem [#allocation7], %s332
          %334 = dma.done %s330, 256
        $region52: #{tpu_custom_call.1} parent=47 // pred_fallthru
          _
      $region48: #{tpu_custom_call.1} parent=5 // pred_fallthru
        _
    $region6: #{tpu_custom_call.1} parent=1 // loop_footer
      %s17 = sadd.s32 1, %s13
    $region7: #{tpu_custom_call.1} parent=1 // loop_footer_branch
      %12 = sbr.rel target = $region3
    $region8: #{tpu_custom_call.1} parent=1 // loop_exit
      _
    %335 = vsyncpa [#allocation5], 1
    %s336 = scalar_lea.sflag [#allocation5], 1
    %337 = vsyncpa %s336, 1
    %338 = vsyncpa [#allocation6], 1
    %s339 = scalar_lea.sflag [#allocation6], 1
    %340 = vsyncpa %s339, 1

</llo_original>
